<compile_context>
chip_gen: v5e
topology: v5e:2x2
jax: 0.10.0
libtpu: 0.0.40
codegen_flags: <defaults>
</compile_context>

<pallas_src>
import jax
import jax.numpy as jnp
from jax.experimental import pallas as pl
from jax.experimental.pallas import tpu as pltpu


def _copy_kernel(x_ref, o_ref):
    # Elementwise pass-through of one VMEM tile (VPU copy).
    o_ref[...] = x_ref[...]


def _passthrough_pallas(x2d: jax.Array) -> jax.Array:
    """Tiled, double-buffered identity copy of a 2-D (rows, cols) slab.

    Tiles are sized to ~2 MiB so that input+output double-buffering (~4 live
    blocks ~ 8 MiB) fits the smallest default scoped-VMEM budget (16 MiB on
    v5e) and leaves ample headroom on v6e (32/128 MiB) and v7x (32/64 MiB).
    The grid axis is marked "parallel" (no carried state), enabling megacore
    sharding across the 2 TensorCores on v7x.
    """
    rows, cols = x2d.shape
    itemsize = jnp.dtype(x2d.dtype).itemsize

    target_block_bytes = 2 * 1024 * 1024
    bytes_per_row = max(1, cols * itemsize)
    tile_r = (target_block_bytes // bytes_per_row) // 8 * 8  # multiple of 8
    tile_r = int(max(8, min(rows, tile_r)))
    if tile_r >= rows or rows < 8:
        tile_r = rows  # full-extent block is always legal
    grid = (pl.cdiv(rows, tile_r),)

    return pl.pallas_call(
        _copy_kernel,
        out_shape=jax.ShapeDtypeStruct((rows, cols), x2d.dtype),
        grid_spec=pl.GridSpec(
            grid=grid,
            in_specs=[pl.BlockSpec((tile_r, cols), lambda i: (i, 0))],
            out_specs=pl.BlockSpec((tile_r, cols), lambda i: (i, 0)),
        ),
        # Alias input 0 -> output 0: no second full-size HBM buffer when the
        # caller donates; XLA inserts a defensive copy otherwise (still safe).
        input_output_aliases={0: 0},
        # Advisory hint: pure memory traffic, zero flops.
        cost_estimate=pl.CostEstimate(
            flops=0,
            transcendentals=0,
            bytes_accessed=2 * rows * cols * itemsize,
        ),
        compiler_params=pltpu.CompilerParams(
            dimension_semantics=("parallel",),
        ),
    )(x2d)


class PallasModule:
    """JAX/Pallas analogue of the abstract torch `Module` base class."""

    def __init__(self):
        # The torch base class registers no parameters; nothing to init.
        self.params = {}

    def forward(self, X: jax.Array, use_pallas: bool = True):
        """Identity stand-in for the abstract forward.

        X: NCHW float array.  Returns a tuple of three tensors, matching the
        declared `tuple[Tensor, Tensor, Tensor]` signature.

        The cheapest identity is no copy at all (`use_pallas=False`); the
        Pallas path exists as the tiled-copy template for concrete subclasses.
        """
        if not use_pallas:
            return (X, X, X)
        n, c, h, w = X.shape
        x2d = X.reshape(n * c, h * w)          # lane-dense flatten (last dim = H*W)
        y2d = _passthrough_pallas(x2d)         # tiled, pipelined pass-through
        y = y2d.reshape(n, c, h, w)
        return (y, y, y)

    def predict(self, X: jax.Array) -> jax.Array:
        return self.forward(X)[0]

    # TODO(synk): save_params/load_params (torch.save/load of state_dict) are
    #             host-side I/O, intentionally not implemented.


if __name__ == "__main__":
    key = jax.random.PRNGKey(0)
    X = jax.random.normal(key, (2, 4, 16, 16), dtype=jnp.float32)  # NCHW

    # Host-side snapshot for comparison (robust even if the aliased input
    # buffer is donated by a future jit-with-donation caller).
    X_host = jax.device_get(X)

    model = PallasModule()
    out = model.forward(X)
    jax.block_until_ready(out)

    # sanity check: identity semantics
    assert out[0].shape == X_host.shape
    assert bool(jnp.allclose(out[0], X_host))
    assert bool(jnp.allclose(out[1], X_host)) and bool(jnp.allclose(out[2], X_host))

    # zero-copy fast path also works
    out_fast = model.forward(jnp.asarray(X_host), use_pallas=False)
    jax.block_until_ready(out_fast)
    assert bool(jnp.allclose(out_fast[0], X_host))

    print("KERNEL_OK")
</pallas_src>

<mosaic_0001>
module attributes {stable_mosaic.version = 11 : i64} {
  func.func @_copy_kernel(%arg0: i32, %arg1: memref<8x256xf32, #tpu.memory_space<vmem>>, %arg2: memref<8x256xf32, #tpu.memory_space<vmem>>) attributes {dimension_semantics = [#tpu.dimension_semantics<parallel>], iteration_bounds = array<i64: 1>, scalar_prefetch = 0 : i64, scratch_operands = 0 : i64, tpu.core_type = #tpu.core_type<tc>, window_params = [{transform_indices = @transform_0, window_bounds = array<i64: 8, 256>}, {transform_indices = @transform_1, window_bounds = array<i64: 8, 256>}]} {
    %c0 = arith.constant 0 : index
    %c0_0 = arith.constant 0 : index
    %0 = vector.load %arg1[%c0, %c0_0] : memref<8x256xf32, #tpu.memory_space<vmem>>, vector<8x256xf32>
    %c0_1 = arith.constant 0 : index
    %c0_2 = arith.constant 0 : index
    %1 = vector.load %arg2[%c0_1, %c0_2] : memref<8x256xf32, #tpu.memory_space<vmem>>, vector<8x256xf32>
    tpu.vector_store %arg2[%c0_1, %c0_2], %0 {strides = array<i32>} : memref<8x256xf32, #tpu.memory_space<vmem>>, vector<8x256xf32>,
    return
  }
  func.func @transform_0(%arg0: i32) -> (i32, i32) {
    %c0_i32 = arith.constant 0 : i32
    %c0_i32_0 = arith.constant 0 : i32
    return %arg0, %c0_i32 : i32, i32
  }
  func.func @transform_1(%arg0: i32) -> (i32, i32) {
    %c0_i32 = arith.constant 0 : i32
    %c0_i32_0 = arith.constant 0 : i32
    return %arg0, %c0_i32 : i32, i32
  }
}

</mosaic_0001>

<llo_original>
// kernel: tpu_custom_call.1
$region0: #{tpu_custom_call.1}
  #allocation0 [shape = 'u32[]', space=smem, size = 0x4, offset = 0x4, fixed_abs, tag = 'smem constant byte address 0x4 - core index']
  #allocation1 [shape = 'u32[72,128]{1,0:T(1,128)}', space=vmem, size = 0x9000, scoped, tag = 'internal scratch']
  %s0 = inlined_call_operand.hbm [shape: f32[8,256], index: 0, kind: input, shape index: {}, may-alias: {0,1}]
  %s1 = inlined_call_operand.hbm [shape: f32[8,256], index: 1, kind: output, shape index: {}, may-alias: {0,1}]
  %s2 = sld [smem:[#allocation0]]
  $region18: #{tpu_custom_call.1} parent=0
    _
  %s4 = ssub.s32 1, %s2
  %s5 = scalar_select 0, %s4, %s2
  $region1: #{tpu_custom_call.1} parent=0
    #allocation2 [shape = 'u8[8192]{0}', space=vmem, size = 0x2000, scoped, tag = 'input window, operand 0, single buffered']
    #allocation3 [shape = 's32[1]{0}', space=sflag, size = 0x4, scoped, tag = 'scoped memory for tpu_custom_call.1']
    #allocation4 [shape = 's32[1]{0}', space=sflag, size = 0x4, scoped, tag = 'scoped memory for tpu_custom_call.1']
    #allocation5 [shape = 'u8[8192]{0}', space=vmem, size = 0x2000, scoped, tag = 'output window, operand 0, single buffered']
    %6 = vsyncpa [#allocation3], 0
    %7 = vsyncpa [#allocation4], 0
    // Predicated region
    $region2: #{tpu_custom_call.1} parent=1 // pred_check
      _
    $region3: #{tpu_custom_call.1} parent=1 // pred_check_branch
      %9 = sbr.rel (0) target = $region5
    $region4: #{tpu_custom_call.1} parent=1 // pred_region
      %11 = vsyncadd [#allocation3], 0
      %s13 = sshll.u32 %s0, 4
      %s14 = int_to_ptr.hbm [resolvable:$true] %s13
      %s15 = sshll.u32 [#allocation2], 4
      %s16 = int_to_ptr.vmem [resolvable:$true] %s15
      %18 = dma.hbm_to_vmem [thread:$0]  %s14, 256, %s16, [#allocation3]
    $region5: #{tpu_custom_call.1} parent=1 // pred_fallthru
      _
    // Predicated region
    $region6: #{tpu_custom_call.1} parent=1 // pred_check
      _
    $region7: #{tpu_custom_call.1} parent=1 // pred_check_branch
      %20 = sbr.rel (0) target = $region9
    $region8: #{tpu_custom_call.1} parent=1 // pred_region
      %22 = dma.done [#allocation3], 256
    $region9: #{tpu_custom_call.1} parent=1 // pred_fallthru
      _
    %v23 = vld [vmem:[#allocation2] sm:$0xff]
    %v24 = vld [vmem:[#allocation2 + $0x8] sm:$0xff]
    %25 = vst [vmem:[#allocation5] sm:$0xff] %v23
    %26 = vst [vmem:[#allocation5 + $0x8] sm:$0xff] %v24
    // Predicated region
    $region10: #{tpu_custom_call.1} parent=1 // pred_check
      _
    $region11: #{tpu_custom_call.1} parent=1 // pred_check_branch
      %28 = sbr.rel (0) target = $region13
    $region12: #{tpu_custom_call.1} parent=1 // pred_region
      %30 = vsyncadd [#allocation4], 0
      %s32 = sshll.u32 [#allocation5], 4
      %s33 = int_to_ptr.vmem [resolvable:$true] %s32
      %s34 = sshll.u32 %s1, 4
      %s35 = int_to_ptr.hbm [resolvable:$true] %s34
      %37 = dma.vmem_to_hbm [thread:$0]  %s33, 256, %s35, [#allocation4]
    $region13: #{tpu_custom_call.1} parent=1 // pred_fallthru
      _
    // Predicated region
    $region14: #{tpu_custom_call.1} parent=1 // pred_check
      _
    $region15: #{tpu_custom_call.1} parent=1 // pred_check_branch
      %39 = sbr.rel (0) target = $region17
    $region16: #{tpu_custom_call.1} parent=1 // pred_region
      %41 = dma.done [#allocation4], 256
    $region17: #{tpu_custom_call.1} parent=1 // pred_fallthru
      _
    %42 = vsyncpa [#allocation3], 1
    %43 = vsyncpa [#allocation4], 1

</llo_original>
